<compile_context>
chip_gen: v5e
topology: v5e:2x2
jax: 0.10.0
libtpu: 0.0.40
codegen_flags: <defaults>
</compile_context>

<pallas_src>
import functools

import jax
import jax.numpy as jnp
from jax import lax
from jax.experimental import pallas as pl
from jax.experimental.pallas import tpu as pltpu
import numpy as np


def _sobelxy_flat_kernel(x_ref, o_ref, *, W):
    # Narrow-image path: block (P, H*W); each plane is one lane-dense row.
    x = x_ref[...].astype(jnp.float32)
    L = x.shape[-1]

    # Hoisted iota + edge masks (JAX does not CSE broadcast_in_dim).
    j = lax.broadcasted_iota(jnp.int32, x.shape, x.ndim - 1)
    c = j % W                    # column index within the plane
    up_ok = j >= W               # row r-1 exists
    dn_ok = j < (L - W)          # row r+1 exists
    lt_ok = c != 0               # col c-1 exists
    rt_ok = c != (W - 1)         # col c+1 exists

    def shift(v, d, valid):
        # y[j] = v[j + d] (flat within-plane offset), zero outside the border
        # (implements conv2d padding=1 without an HBM pad round trip).
        rolled = pltpu.roll(v, shift=(-d) % L, axis=v.ndim - 1)
        return jnp.where(valid, rolled, 0.0)

    # Vertical passes (flat offset +-W).
    up = shift(x, -W, up_ok)           # x[r-1, c]
    dn = shift(x, +W, dn_ok)           # x[r+1, c]
    a = (up + dn) + (x + x)            # vertical [1, 2, 1]
    b = up - dn                        # vertical [1, 0, -1]

    # Horizontal passes (flat offset +-1).
    a_l = shift(a, -1, lt_ok)          # a[r, c-1]
    a_r = shift(a, +1, rt_ok)          # a[r, c+1]
    b_l = shift(b, -1, lt_ok)
    b_r = shift(b, +1, rt_ok)

    sobelx = a_l - a_r                 # horizontal [1, 0, -1] on a
    sobely = (b_l + b_r) + (b + b)     # horizontal [1, 2, 1]  on b

    o_ref[...] = (jnp.abs(sobelx) + jnp.abs(sobely)).astype(o_ref.dtype)


def _sobelxy_plane_kernel(x_ref, o_ref):
    # Wide-image path: block (P, H, W); W -> lanes, H -> sublanes.
    x = x_ref[...].astype(jnp.float32)
    _, H, W = x.shape

    row = lax.broadcasted_iota(jnp.int32, x.shape, 1)
    col = lax.broadcasted_iota(jnp.int32, x.shape, 2)

    def shift(v, d, axis, idx):
        # y[..., i, ...] = v[..., i+d, ...] along `axis`, zero outside bounds.
        size = v.shape[axis]
        rolled = pltpu.roll(v, shift=(-d) % size, axis=axis)
        valid = idx < (size - d) if d > 0 else idx >= (-d)
        return jnp.where(valid, rolled, 0.0)

    up = shift(x, -1, 1, row)          # x[i-1, j]
    dn = shift(x, +1, 1, row)          # x[i+1, j]
    a = (up + dn) + (x + x)            # vertical [1, 2, 1]
    b = up - dn                        # vertical [1, 0, -1]

    a_l = shift(a, -1, 2, col)
    a_r = shift(a, +1, 2, col)
    b_l = shift(b, -1, 2, col)
    b_r = shift(b, +1, 2, col)

    sobelx = a_l - a_r                 # horizontal [1, 0, -1] on a
    sobely = (b_l + b_r) + (b + b)     # horizontal [1, 2, 1]  on b

    o_ref[...] = (jnp.abs(sobelx) + jnp.abs(sobely)).astype(o_ref.dtype)


def sobelxy_pallas(x, *, vmem_budget_bytes=12 * 1024 * 1024):
    """x: (N, C, H, W) float array. Returns |sobel_x(x)| + |sobel_y(x)| (NCHW)."""
    N, C, H, W = x.shape
    NC = N * C
    itemsize = int(jnp.dtype(x.dtype).itemsize)
    # Per-plane VMEM: double-buffered in+out blocks (4 * itemsize) plus ~8 live
    # f32 temporaries in the body.  Budget kept under the smallest scoped-VMEM
    # default (v5e/v6e/v7x) so no vmem_limit override is needed.
    per_plane = (4 * itemsize + 8 * 4) * H * W

    def pick_planes(align8):
        P = max(1, min(NC, vmem_budget_bytes // max(per_plane, 1), 256))
        if NC >= 2:
            P = min(P, pl.cdiv(NC, 2))   # keep >=2 grid steps for megacore
        if align8 and P < NC:
            # 2-D layout: plane axis sits on sublanes -> block must be a
            # multiple of 8 (or the full extent).
            P = min(NC, max(8, (P // 8) * 8))
        return int(P)

    # Flattened lane-dense layout only pays off (and only needs the gate) when
    # W is narrower than a vreg's 128 lanes and the aligned block fits VMEM.
    use_flat = (W < 128) and (min(NC, 8) * per_plane <= vmem_budget_bytes)

    if use_flat:
        L = H * W
        P = pick_planes(align8=True)
        planes = x.reshape(NC, L)
        out = pl.pallas_call(
            functools.partial(_sobelxy_flat_kernel, W=W),
            out_shape=jax.ShapeDtypeStruct((NC, L), x.dtype),
            grid=(pl.cdiv(NC, P),),
            in_specs=[pl.BlockSpec((P, L), lambda i: (i, 0))],
            out_specs=pl.BlockSpec((P, L), lambda i: (i, 0)),
            compiler_params=pltpu.CompilerParams(
                dimension_semantics=("parallel",)),
        )(planes)
    else:
        P = pick_planes(align8=False)
        planes = x.reshape(NC, H, W)
        out = pl.pallas_call(
            _sobelxy_plane_kernel,
            out_shape=jax.ShapeDtypeStruct((NC, H, W), x.dtype),
            grid=(pl.cdiv(NC, P),),
            in_specs=[pl.BlockSpec((P, H, W), lambda i: (i, 0, 0))],
            out_specs=pl.BlockSpec((P, H, W), lambda i: (i, 0, 0)),
            compiler_params=pltpu.CompilerParams(
                dimension_semantics=("parallel",)),
        )(planes)
    return out.reshape(N, C, H, W)


def sobelxy_reference(x):
    """Pure-JAX reference matching the PyTorch module (depthwise conv)."""
    N, C, H, W = x.shape
    sob = jnp.array([[1., 0., -1.], [2., 0., -2.], [1., 0., -1.]], dtype=x.dtype)
    wx = jnp.broadcast_to(sob, (C, 1, 3, 3))
    wy = jnp.broadcast_to(sob.T, (C, 1, 3, 3))
    convx = lax.conv_general_dilated(
        x, wx, window_strides=(1, 1), padding=((1, 1), (1, 1)),
        dimension_numbers=("NCHW", "OIHW", "NCHW"), feature_group_count=C)
    convy = lax.conv_general_dilated(
        x, wy, window_strides=(1, 1), padding=((1, 1), (1, 1)),
        dimension_numbers=("NCHW", "OIHW", "NCHW"), feature_group_count=C)
    return jnp.abs(convx) + jnp.abs(convy)


if __name__ == "__main__":
    key = jax.random.PRNGKey(0)
    N, C, H, W = 2, 4, 16, 16
    x = jax.random.normal(key, (N, C, H, W), dtype=jnp.float32)

    out = jax.block_until_ready(sobelxy_pallas(x))
    ref = jax.block_until_ready(sobelxy_reference(x))
    assert out.shape == (N, C, H, W) and out.dtype == x.dtype
    assert np.allclose(np.asarray(out), np.asarray(ref), atol=1e-4, rtol=1e-4)

    # Also exercise the wide-plane (W >= 128 lanes) 3-D path.
    x2 = jax.random.normal(jax.random.PRNGKey(1), (1, 2, 8, 128), dtype=jnp.float32)
    out2 = jax.block_until_ready(sobelxy_pallas(x2))
    ref2 = jax.block_until_ready(sobelxy_reference(x2))
    assert np.allclose(np.asarray(out2), np.asarray(ref2), atol=1e-4, rtol=1e-4)

    print("KERNEL_OK")
</pallas_src>

<mosaic_0001>
module attributes {stable_mosaic.version = 11 : i64} {
  func.func @_sobelxy_flat_kernel(%arg0: i32, %arg1: memref<8x256xf32, #tpu.memory_space<vmem>>, %arg2: memref<8x256xf32, #tpu.memory_space<vmem>>) attributes {dimension_semantics = [#tpu.dimension_semantics<parallel>], iteration_bounds = array<i64: 1>, scalar_prefetch = 0 : i64, scratch_operands = 0 : i64, tpu.core_type = #tpu.core_type<tc>, window_params = [{transform_indices = @transform_0, window_bounds = array<i64: 8, 256>}, {transform_indices = @transform_1, window_bounds = array<i64: 8, 256>}]} {
    %c0 = arith.constant 0 : index
    %c0_0 = arith.constant 0 : index
    %0 = vector.load %arg1[%c0, %c0_0] : memref<8x256xf32, #tpu.memory_space<vmem>>, vector<8x256xf32>
    %1 = tpu.iota {dimensions = array<i32: 1>} : vector<8x256xi32>
    %c16_i32 = arith.constant 16 : i32
    %c0_i32 = arith.constant 0 : i32
    %2 = arith.cmpi eq, %c16_i32, %c0_i32 : i32
    %c1_i32 = arith.constant 1 : i32
    %3 = arith.select %2, %c1_i32, %c16_i32 : i32
    %4 = vector.broadcast %3 : i32 to vector<8x256xi32>
    %5 = arith.remsi %1, %4 : vector<8x256xi32>
    %c0_i32_1 = arith.constant 0 : i32
    %6 = vector.broadcast %c0_i32_1 : i32 to vector<8x256xi32>
    %7 = arith.cmpi ne, %5, %6 : vector<8x256xi32>
    %c0_i32_2 = arith.constant 0 : i32
    %8 = vector.broadcast %c0_i32_2 : i32 to vector<8x256xi32>
    %9 = arith.cmpi slt, %5, %8 : vector<8x256xi32>
    %c0_i32_3 = arith.constant 0 : i32
    %10 = arith.cmpi slt, %3, %c0_i32_3 : i32
    %11 = vector.broadcast %10 : i1 to vector<8x256xi1>
    %12 = vector.broadcast %11 : vector<8x256xi1> to vector<8x256xi1>
    %13 = arith.xori %9, %12 : vector<8x256xi1>
    %14 = arith.andi %13, %7 : vector<8x256xi1>
    %15 = vector.broadcast %3 : i32 to vector<8x256xi32>
    %16 = arith.addi %5, %15 : vector<8x256xi32>
    %17 = arith.select %14, %16, %5 : vector<8x256xi1>, vector<8x256xi32>
    %c16_i32_4 = arith.constant 16 : i32
    %18 = vector.broadcast %c16_i32_4 : i32 to vector<8x256xi32>
    %19 = arith.cmpi sge, %1, %18 : vector<8x256xi32>
    %c240_i32 = arith.constant 240 : i32
    %20 = vector.broadcast %c240_i32 : i32 to vector<8x256xi32>
    %21 = arith.cmpi slt, %1, %20 : vector<8x256xi32>
    %c0_i32_5 = arith.constant 0 : i32
    %22 = vector.broadcast %c0_i32_5 : i32 to vector<8x256xi32>
    %23 = arith.cmpi ne, %17, %22 : vector<8x256xi32>
    %c15_i32 = arith.constant 15 : i32
    %24 = vector.broadcast %c15_i32 : i32 to vector<8x256xi32>
    %25 = arith.cmpi ne, %17, %24 : vector<8x256xi32>
    %c16_i32_6 = arith.constant 16 : i32
    %26 = tpu.dynamic_rotate %0 by %c16_i32_6 dim 1 : vector<8x256xf32>, i32 -> vector<8x256xf32>
    %cst = arith.constant 0.000000e+00 : f32
    %27 = vector.broadcast %cst : f32 to vector<8x256xf32>
    %28 = arith.select %19, %26, %27 : vector<8x256xi1>, vector<8x256xf32>
    %c240_i32_7 = arith.constant 240 : i32
    %29 = tpu.dynamic_rotate %0 by %c240_i32_7 dim 1 : vector<8x256xf32>, i32 -> vector<8x256xf32>
    %cst_8 = arith.constant 0.000000e+00 : f32
    %30 = vector.broadcast %cst_8 : f32 to vector<8x256xf32>
    %31 = arith.select %21, %29, %30 : vector<8x256xi1>, vector<8x256xf32>
    %32 = arith.addf %28, %31 : vector<8x256xf32>
    %33 = arith.addf %0, %0 : vector<8x256xf32>
    %34 = arith.addf %32, %33 : vector<8x256xf32>
    %35 = arith.subf %28, %31 : vector<8x256xf32>
    %c1_i32_9 = arith.constant 1 : i32
    %36 = tpu.dynamic_rotate %34 by %c1_i32_9 dim 1 : vector<8x256xf32>, i32 -> vector<8x256xf32>
    %cst_10 = arith.constant 0.000000e+00 : f32
    %37 = vector.broadcast %cst_10 : f32 to vector<8x256xf32>
    %38 = arith.select %23, %36, %37 : vector<8x256xi1>, vector<8x256xf32>
    %c255_i32 = arith.constant 255 : i32
    %39 = tpu.dynamic_rotate %34 by %c255_i32 dim 1 : vector<8x256xf32>, i32 -> vector<8x256xf32>
    %cst_11 = arith.constant 0.000000e+00 : f32
    %40 = vector.broadcast %cst_11 : f32 to vector<8x256xf32>
    %41 = arith.select %25, %39, %40 : vector<8x256xi1>, vector<8x256xf32>
    %c1_i32_12 = arith.constant 1 : i32
    %42 = tpu.dynamic_rotate %35 by %c1_i32_12 dim 1 : vector<8x256xf32>, i32 -> vector<8x256xf32>
    %cst_13 = arith.constant 0.000000e+00 : f32
    %43 = vector.broadcast %cst_13 : f32 to vector<8x256xf32>
    %44 = arith.select %23, %42, %43 : vector<8x256xi1>, vector<8x256xf32>
    %c255_i32_14 = arith.constant 255 : i32
    %45 = tpu.dynamic_rotate %35 by %c255_i32_14 dim 1 : vector<8x256xf32>, i32 -> vector<8x256xf32>
    %cst_15 = arith.constant 0.000000e+00 : f32
    %46 = vector.broadcast %cst_15 : f32 to vector<8x256xf32>
    %47 = arith.select %25, %45, %46 : vector<8x256xi1>, vector<8x256xf32>
    %48 = arith.subf %38, %41 : vector<8x256xf32>
    %49 = arith.addf %44, %47 : vector<8x256xf32>
    %50 = arith.addf %35, %35 : vector<8x256xf32>
    %51 = arith.addf %49, %50 : vector<8x256xf32>
    %52 = math.absf %48 : vector<8x256xf32>
    %53 = math.absf %51 : vector<8x256xf32>
    %54 = arith.addf %52, %53 : vector<8x256xf32>
    %c0_16 = arith.constant 0 : index
    %c0_17 = arith.constant 0 : index
    %55 = vector.load %arg2[%c0_16, %c0_17] : memref<8x256xf32, #tpu.memory_space<vmem>>, vector<8x256xf32>
    tpu.vector_store %arg2[%c0_16, %c0_17], %54 {strides = array<i32>} : memref<8x256xf32, #tpu.memory_space<vmem>>, vector<8x256xf32>,
    return
  }
  func.func @transform_0(%arg0: i32) -> (i32, i32) {
    %c0_i32 = arith.constant 0 : i32
    %c0_i32_0 = arith.constant 0 : i32
    return %arg0, %c0_i32 : i32, i32
  }
  func.func @transform_1(%arg0: i32) -> (i32, i32) {
    %c0_i32 = arith.constant 0 : i32
    %c0_i32_0 = arith.constant 0 : i32
    return %arg0, %c0_i32 : i32, i32
  }
}

</mosaic_0001>

<llo_original>
// kernel: tpu_custom_call.1
$region0: #{tpu_custom_call.1}
  #allocation0 [shape = 'u32[]', space=smem, size = 0x4, offset = 0x4, fixed_abs, tag = 'smem constant byte address 0x4 - core index']
  #allocation1 [shape = 'u32[72,128]{1,0:T(1,128)}', space=vmem, size = 0x9000, scoped, tag = 'internal scratch']
  %s0 = inlined_call_operand.hbm [shape: f32[8,256], index: 0, kind: input, shape index: {}]
  %s1 = inlined_call_operand.hbm [shape: f32[8,256], index: 1, kind: output, shape index: {}]
  %s2 = sld [smem:[#allocation0]]
  $region18: #{tpu_custom_call.1} parent=0
    _
  %s4 = ssub.s32 1, %s2
  %s5 = scalar_select 0, %s4, %s2
  $region1: #{tpu_custom_call.1} parent=0
    #allocation2 [shape = 'u8[8192]{0}', space=vmem, size = 0x2000, scoped, tag = 'input window, operand 0, single buffered']
    #allocation3 [shape = 's32[1]{0}', space=sflag, size = 0x4, scoped, tag = 'scoped memory for tpu_custom_call.1']
    #allocation4 [shape = 's32[1]{0}', space=sflag, size = 0x4, scoped, tag = 'scoped memory for tpu_custom_call.1']
    #allocation5 [shape = 'u8[8192]{0}', space=vmem, size = 0x2000, scoped, tag = 'output window, operand 0, single buffered']
    %6 = vsyncpa [#allocation3], 0
    %7 = vsyncpa [#allocation4], 0
    // Predicated region
    $region2: #{tpu_custom_call.1} parent=1 // pred_check
      _
    $region3: #{tpu_custom_call.1} parent=1 // pred_check_branch
      %9 = sbr.rel (0) target = $region5
    $region4: #{tpu_custom_call.1} parent=1 // pred_region
      %11 = vsyncadd [#allocation3], 0
      %s13 = sshll.u32 %s0, 4
      %s14 = int_to_ptr.hbm [resolvable:$true] %s13
      %s15 = sshll.u32 [#allocation2], 4
      %s16 = int_to_ptr.vmem [resolvable:$true] %s15
      %18 = dma.hbm_to_vmem [thread:$0]  %s14, 256, %s16, [#allocation3]
    $region5: #{tpu_custom_call.1} parent=1 // pred_fallthru
      _
    // Predicated region
    $region6: #{tpu_custom_call.1} parent=1 // pred_check
      _
    $region7: #{tpu_custom_call.1} parent=1 // pred_check_branch
      %20 = sbr.rel (0) target = $region9
    $region8: #{tpu_custom_call.1} parent=1 // pred_region
      %22 = dma.done [#allocation3], 256
    $region9: #{tpu_custom_call.1} parent=1 // pred_fallthru
      _
    %v23 = vld [vmem:[#allocation2] sm:$0xff]
    %v24 = vld [vmem:[#allocation2 + $0x8] sm:$0xff]
    %v25 = vlaneseq
    %v26 = vand.u32 %v25, 127
    %v27 = vadd.s32 %v26, 128
    %vm28 = vcmp.lt.s32.totalorder %v26, 0
    %v29 = vsub.s32 0, %v26
    %v30 = vsel %vm28, %v29, %v26
    %v31 = vshrl.u32 %v30, 4
    %v32 = vand.u32 %v30, 15
    %v33 = vsub.s32 0, %v32
    %v34 = vsel %vm28, %v33, %v32
    %vm35 = vcmp.lt.s32.totalorder %v27, 0
    %v36 = vsub.s32 0, %v27
    %v37 = vsel %vm35, %v36, %v27
    %v38 = vshrl.u32 %v37, 4
    %v39 = vand.u32 %v37, 15
    %v40 = vsub.s32 0, %v39
    %v41 = vsel %vm35, %v40, %v39
    %vm42 = vcmp.ne.s32.totalorder %v34, 0
    %vm43 = vcmp.ne.s32.totalorder %v41, 0
    %vm44 = vcmp.lt.s32.totalorder %v34, 0
    %vm45 = vcmp.lt.s32.totalorder %v41, 0
    %vm46 = vmand %vm44, %vm42
    %vm47 = vmand %vm45, %vm43
    %v48 = vadd.s32 %v34, 16
    %v49 = vadd.s32 %v41, 16
    %v50 = vsel %vm46, %v48, %v34
    %v51 = vsel %vm47, %v49, %v41
    %vm52 = vcmp.ge.s32.totalorder %v26, 16
    %vm53 = vcmp.ge.s32.totalorder %v27, 16
    %vm54 = vcmp.lt.s32.totalorder %v26, 240
    %vm55 = vcmp.lt.s32.totalorder %v27, 240
    %vm56 = vcmp.ne.s32.totalorder %v50, 0
    %vm57 = vcmp.ne.s32.totalorder %v51, 0
    %vm58 = vcmp.ne.s32.totalorder %v50, 15
    %vm59 = vcmp.ne.s32.totalorder %v51, 15
    %60 = vrot.lane.b32.xlu0 %v23, 16
    %v61 = vpop.permute.xlu0 %60
    %62 = vrot.lane.b32.xlu0 %v24, 16
    %v63 = vpop.permute.xlu0 %62
    %vm64 = vcmp.lt.s32.totalorder %v26, 16
    %v65 = vsel %vm64, %v61, %v63
    %v66 = vsel %vm64, %v63, %v61
    %v67 = vsel %vm52, %v66, 0.0
    %v68 = vsel %vm53, %v65, 0.0
    %69 = vrot.lane.b32.xlu0 %v23, 112
    %v70 = vpop.permute.xlu0 %69
    %71 = vrot.lane.b32.xlu0 %v24, 112
    %v72 = vpop.permute.xlu0 %71
    %vm73 = vcmp.lt.s32.totalorder %v26, 112
    %v74 = vsel %vm73, %v70, %v72
    %v75 = vsel %vm73, %v72, %v70
    %v76 = vsel %vm54, %v74, 0.0
    %v77 = vsel %vm55, %v75, 0.0
    %v78 = vadd.f32 %v67, %v76
    %v79 = vadd.f32 %v68, %v77
    %v80 = vadd.f32 %v23, %v23
    %v81 = vadd.f32 %v24, %v24
    %v82 = vadd.f32 %v78, %v80
    %v83 = vadd.f32 %v79, %v81
    %v84 = vsub.f32 %v67, %v76
    %v85 = vsub.f32 %v68, %v77
    %86 = vrot.lane.b32.xlu0 %v82, 1
    %v87 = vpop.permute.xlu0 %86
    %88 = vrot.lane.b32.xlu0 %v83, 1
    %v89 = vpop.permute.xlu0 %88
    %vm90 = vcmp.lt.s32.totalorder %v26, 1
    %v91 = vsel %vm90, %v87, %v89
    %v92 = vsel %vm90, %v89, %v87
    %v93 = vsel %vm56, %v92, 0.0
    %v94 = vsel %vm57, %v91, 0.0
    %95 = vrot.lane.b32.xlu0 %v82, 127
    %v96 = vpop.permute.xlu0 %95
    %97 = vrot.lane.b32.xlu0 %v83, 127
    %v98 = vpop.permute.xlu0 %97
    %vm99 = vcmp.lt.s32.totalorder %v26, 127
    %v100 = vsel %vm99, %v96, %v98
    %v101 = vsel %vm99, %v98, %v96
    %v102 = vsel %vm58, %v100, 0.0
    %v103 = vsel %vm59, %v101, 0.0
    %104 = vrot.lane.b32.xlu0 %v84, 1
    %v105 = vpop.permute.xlu0 %104
    %106 = vrot.lane.b32.xlu0 %v85, 1
    %v107 = vpop.permute.xlu0 %106
    %v108 = vsel %vm90, %v105, %v107
    %v109 = vsel %vm90, %v107, %v105
    %v110 = vsel %vm56, %v109, 0.0
    %v111 = vsel %vm57, %v108, 0.0
    %112 = vrot.lane.b32.xlu0 %v84, 127
    %v113 = vpop.permute.xlu0 %112
    %114 = vrot.lane.b32.xlu0 %v85, 127
    %v115 = vpop.permute.xlu0 %114
    %v116 = vsel %vm99, %v113, %v115
    %v117 = vsel %vm99, %v115, %v113
    %v118 = vsel %vm58, %v116, 0.0
    %v119 = vsel %vm59, %v117, 0.0
    %v120 = vsub.f32 %v93, %v102
    %v121 = vsub.f32 %v94, %v103
    %v122 = vadd.f32 %v110, %v118
    %v123 = vadd.f32 %v111, %v119
    %v124 = vadd.f32 %v84, %v84
    %v125 = vadd.f32 %v85, %v85
    %v126 = vadd.f32 %v122, %v124
    %v127 = vadd.f32 %v123, %v125
    %v128 = vand.u32 2147483647, %v120
    %v129 = vand.u32 2147483647, %v121
    %v130 = vand.u32 2147483647, %v126
    %v131 = vand.u32 2147483647, %v127
    %v132 = vadd.f32 %v128, %v130
    %v133 = vadd.f32 %v129, %v131
    %134 = vst [vmem:[#allocation5] sm:$0xff] %v132
    %135 = vst [vmem:[#allocation5 + $0x8] sm:$0xff] %v133
    // Predicated region
    $region10: #{tpu_custom_call.1} parent=1 // pred_check
      _
    $region11: #{tpu_custom_call.1} parent=1 // pred_check_branch
      %137 = sbr.rel (0) target = $region13
    $region12: #{tpu_custom_call.1} parent=1 // pred_region
      %139 = vsyncadd [#allocation4], 0
      %s141 = sshll.u32 [#allocation5], 4
      %s142 = int_to_ptr.vmem [resolvable:$true] %s141
      %s143 = sshll.u32 %s1, 4
      %s144 = int_to_ptr.hbm [resolvable:$true] %s143
      %146 = dma.vmem_to_hbm [thread:$0]  %s142, 256, %s144, [#allocation4]
    $region13: #{tpu_custom_call.1} parent=1 // pred_fallthru
      _
    // Predicated region
    $region14: #{tpu_custom_call.1} parent=1 // pred_check
      _
    $region15: #{tpu_custom_call.1} parent=1 // pred_check_branch
      %148 = sbr.rel (0) target = $region17
    $region16: #{tpu_custom_call.1} parent=1 // pred_region
      %150 = dma.done [#allocation4], 256
    $region17: #{tpu_custom_call.1} parent=1 // pred_fallthru
      _
    %151 = vsyncpa [#allocation3], 1
    %152 = vsyncpa [#allocation4], 1

</llo_original>
